<compile_context>
chip_gen: v7x
topology: tpu7x:2x2x1
jax: 0.10.0
libtpu: 0.0.40
codegen_flags: <defaults>
</compile_context>

<pallas_src>
import functools

import jax
import jax.numpy as jnp
from jax.experimental import pallas as pl
from jax.experimental.pallas import tpu as pltpu

PAD = 128  # lane padding for all feature dimensions


# ----------------------------- Pallas kernel -------------------------------
def _ls_mlp_kernel(*refs, use_bias):
    """Fused LocationScaleMLP forward.

    use_bias=True  refs: x(N,128) f32, w(L,128,128) bf16, b(L,1,128) f32,
                         wout(128,128) bf16, bout(1,128) f32, out(N,128) f32
    use_bias=False refs: x, w, wout, out   (root=True: no biases at all)

    out lane 0 = location, lane 1 = scale.
    """
    if use_bias:
        x_ref, w_ref, b_ref, wout_ref, bout_ref, out_ref = refs
    else:
        x_ref, w_ref, wout_ref, out_ref = refs
        b_ref = bout_ref = None

    h = x_ref[...]
    num_layers = w_ref.shape[0]
    for l in range(num_layers):  # static unroll — layer count known at trace time
        acc = jnp.dot(h.astype(jnp.bfloat16), w_ref[l],
                      preferred_element_type=jnp.float32)
        if use_bias:
            acc = acc + b_ref[l]
        h = jnp.maximum(acc, 0.0)  # NLA = ReLU

    # Both heads in one matmul (packed weights: lane 0 = location, lane 1 = scale).
    o = jnp.dot(h.astype(jnp.bfloat16), wout_ref[...],
                preferred_element_type=jnp.float32)
    if use_bias:
        o = o + bout_ref[...]
    out_ref[...] = o


def _run_fused(x_pad, params):
    use_bias = params["use_bias"]
    w, wout = params["w"], params["wout"]
    n = x_pad.shape[0]
    num_layers = w.shape[0]

    if use_bias:
        operands = (x_pad, w, params["b"], wout, params["bout"])
    else:
        operands = (x_pad, w, wout)

    flops = 2 * n * PAD * PAD * (num_layers + 1)
    bytes_accessed = sum(int(a.size) * a.dtype.itemsize for a in operands) + n * PAD * 4

    kernel = functools.partial(_ls_mlp_kernel, use_bias=use_bias)
    return pl.pallas_call(
        kernel,
        out_shape=jax.ShapeDtypeStruct((n, PAD), jnp.float32),
        in_specs=[pl.BlockSpec(memory_space=pltpu.MemorySpace.VMEM)] * len(operands),
        out_specs=pl.BlockSpec(memory_space=pltpu.MemorySpace.VMEM),
        cost_estimate=pl.CostEstimate(flops=flops, transcendentals=0,
                                      bytes_accessed=bytes_accessed),
    )(*operands)


# ----------------------- module forward (Pallas-backed) --------------------
def location_scale_mlp_forward(x, params):
    """Mirrors LocationScaleMLP.forward: returns (location, scale), each (N, 1)."""
    n = x.shape[0]
    d_in = params["d_in"]
    x_pad = jnp.zeros((n, PAD), jnp.float32).at[:, :d_in].set(
        x[:, :d_in].astype(jnp.float32))
    out = _run_fused(x_pad, params)          # (N, 128), lane-dense
    return out[:, 0:1], out[:, 1:2]          # location, scale


# --------------------------- parameter building ----------------------------
def _init_linear(key, din, dout, use_bias):
    # PyTorch nn.Linear default init: U(-1/sqrt(in), 1/sqrt(in))
    kw, kb = jax.random.split(key)
    bound = 1.0 / jnp.sqrt(jnp.float32(din))
    w = jax.random.uniform(kw, (din, dout), jnp.float32, -bound, bound)
    if use_bias:
        b = jax.random.uniform(kb, (dout,), jnp.float32, -bound, bound)
    else:
        b = jnp.zeros((dout,), jnp.float32)
    return w, b


def make_location_scale_mlp_params(key, arch, root=False):
    """arch = [d_in, h1, ..., h_last]; heads map arch[-1] -> 1 each (loc, scale)."""
    use_bias = not root
    num_layers = len(arch) - 1
    keys = jax.random.split(key, num_layers + 2)

    ws, bs = [], []
    for i in range(num_layers):
        wi, bi = _init_linear(keys[i], arch[i], arch[i + 1], use_bias)
        ws.append(jnp.zeros((PAD, PAD), jnp.float32)
                  .at[: arch[i], : arch[i + 1]].set(wi))
        bs.append(jnp.zeros((1, PAD), jnp.float32).at[0, : arch[i + 1]].set(bi))

    # Pack the two heads into one weight matrix / one bias row.
    w_loc, b_loc = _init_linear(keys[num_layers], arch[-1], 1, use_bias)
    w_scl, b_scl = _init_linear(keys[num_layers + 1], arch[-1], 1, use_bias)
    wout = (jnp.zeros((PAD, PAD), jnp.float32)
            .at[: arch[-1], 0:1].set(w_loc)
            .at[: arch[-1], 1:2].set(w_scl))
    bout = (jnp.zeros((1, PAD), jnp.float32)
            .at[0, 0].set(b_loc[0])
            .at[0, 1].set(b_scl[0]))

    return {
        "w": jnp.stack(ws).astype(jnp.bfloat16),   # (L, 128, 128) bf16
        "b": jnp.stack(bs),                        # (L, 1, 128)   f32
        "wout": wout.astype(jnp.bfloat16),         # (128, 128)    bf16
        "bout": bout,                              # (1, 128)      f32
        "use_bias": use_bias,
        "d_in": arch[0],
    }


# ------------------------------ reference ----------------------------------
def _ref_forward(x, params):
    """Pure-JAX reference of the same math (bf16 matmul inputs, f32 accumulate)."""
    n = x.shape[0]
    d_in = params["d_in"]
    h = jnp.zeros((n, PAD), jnp.float32).at[:, :d_in].set(x[:, :d_in])
    w, b = params["w"], params["b"]
    for l in range(w.shape[0]):
        acc = jnp.dot(h.astype(jnp.bfloat16), w[l], preferred_element_type=jnp.float32)
        if params["use_bias"]:
            acc = acc + b[l]
        h = jnp.maximum(acc, 0.0)
    o = jnp.dot(h.astype(jnp.bfloat16), params["wout"],
                preferred_element_type=jnp.float32)
    if params["use_bias"]:
        o = o + params["bout"]
    return o[:, 0:1], o[:, 1:2]


if __name__ == "__main__":
    # LocationScaleMLP(ARCH=[4, 32, 32], NLA=ReLU): 2 hidden layers, heads 32 -> 1.
    ARCH = [4, 32, 32]
    BATCH = 8

    key = jax.random.PRNGKey(0)
    k_p, k_r, k_x = jax.random.split(key, 3)

    params = make_location_scale_mlp_params(k_p, ARCH, root=False)       # with biases
    params_root = make_location_scale_mlp_params(k_r, ARCH, root=True)   # bias-free

    x = jax.random.normal(k_x, (BATCH, ARCH[0]), jnp.float32)

    loc, scale = location_scale_mlp_forward(x, params)
    loc_r, scale_r = location_scale_mlp_forward(x, params_root)
    jax.block_until_ready((loc, scale, loc_r, scale_r))

    ref_loc, ref_scale = _ref_forward(x, params)
    ref_loc_r, ref_scale_r = _ref_forward(x, params_root)

    assert loc.shape == (BATCH, 1) and scale.shape == (BATCH, 1)
    assert loc_r.shape == (BATCH, 1) and scale_r.shape == (BATCH, 1)
    assert jnp.allclose(loc, ref_loc, atol=1e-4, rtol=1e-4)
    assert jnp.allclose(scale, ref_scale, atol=1e-4, rtol=1e-4)
    assert jnp.allclose(loc_r, ref_loc_r, atol=1e-4, rtol=1e-4)
    assert jnp.allclose(scale_r, ref_scale_r, atol=1e-4, rtol=1e-4)

    print("KERNEL_OK")
</pallas_src>

<mosaic_0001>
module attributes {stable_mosaic.version = 11 : i64} {
  func.func @_ls_mlp_kernel(%arg0: memref<8x128xf32, #tpu.memory_space<vmem>>, %arg1: memref<2x128x128xbf16, #tpu.memory_space<vmem>>, %arg2: memref<2x1x128xf32, #tpu.memory_space<vmem>>, %arg3: memref<128x128xbf16, #tpu.memory_space<vmem>>, %arg4: memref<1x128xf32, #tpu.memory_space<vmem>>, %arg5: memref<8x128xf32, #tpu.memory_space<vmem>>) attributes {dimension_semantics = [], scalar_prefetch = 0 : i64, scratch_operands = 0 : i64, tpu.core_type = #tpu.core_type<tc>} {
    %c0 = arith.constant 0 : index
    %c0_0 = arith.constant 0 : index
    %0 = vector.load %arg0[%c0, %c0_0] : memref<8x128xf32, #tpu.memory_space<vmem>>, vector<8x128xf32>
    %1 = arith.truncf %0 : vector<8x128xf32> to vector<8x128xbf16>
    %c0_1 = arith.constant 0 : index
    %c0_2 = arith.constant 0 : index
    %c0_3 = arith.constant 0 : index
    %2 = vector.load %arg1[%c0_1, %c0_2, %c0_3] : memref<2x128x128xbf16, #tpu.memory_space<vmem>>, vector<1x128x128xbf16>
    %3 = vector.shape_cast %2 : vector<1x128x128xbf16> to vector<128x128xbf16>
    %cst = arith.constant dense<0.000000e+00> : vector<8x128xf32>
    %4 = tpu.matmul %1, %3, %cst {dimension_numbers = #tpu.dot_dimension_numbers<[1], [0], [0], [1], [0, 0, 1, 1], [], []>} : vector<8x128xbf16>, vector<128x128xbf16>, vector<8x128xf32> -> vector<8x128xf32>
    %c0_4 = arith.constant 0 : index
    %c0_5 = arith.constant 0 : index
    %c0_6 = arith.constant 0 : index
    %5 = vector.load %arg2[%c0_4, %c0_5, %c0_6] : memref<2x1x128xf32, #tpu.memory_space<vmem>>, vector<1x1x128xf32>
    %6 = vector.shape_cast %5 : vector<1x1x128xf32> to vector<1x128xf32>
    %7 = vector.broadcast %6 : vector<1x128xf32> to vector<8x128xf32>
    %8 = arith.addf %4, %7 : vector<8x128xf32>
    %cst_7 = arith.constant 0.000000e+00 : f32
    %9 = vector.broadcast %cst_7 : f32 to vector<8x128xf32>
    %10 = arith.maximumf %8, %9 : vector<8x128xf32>
    %11 = arith.truncf %10 : vector<8x128xf32> to vector<8x128xbf16>
    %c1 = arith.constant 1 : index
    %c0_8 = arith.constant 0 : index
    %c0_9 = arith.constant 0 : index
    %12 = vector.load %arg1[%c1, %c0_8, %c0_9] : memref<2x128x128xbf16, #tpu.memory_space<vmem>>, vector<1x128x128xbf16>
    %13 = vector.shape_cast %12 : vector<1x128x128xbf16> to vector<128x128xbf16>
    %cst_10 = arith.constant dense<0.000000e+00> : vector<8x128xf32>
    %14 = tpu.matmul %11, %13, %cst_10 {dimension_numbers = #tpu.dot_dimension_numbers<[1], [0], [0], [1], [0, 0, 1, 1], [], []>} : vector<8x128xbf16>, vector<128x128xbf16>, vector<8x128xf32> -> vector<8x128xf32>
    %c1_11 = arith.constant 1 : index
    %c0_12 = arith.constant 0 : index
    %c0_13 = arith.constant 0 : index
    %15 = vector.load %arg2[%c1_11, %c0_12, %c0_13] : memref<2x1x128xf32, #tpu.memory_space<vmem>>, vector<1x1x128xf32>
    %16 = vector.shape_cast %15 : vector<1x1x128xf32> to vector<1x128xf32>
    %17 = vector.broadcast %16 : vector<1x128xf32> to vector<8x128xf32>
    %18 = arith.addf %14, %17 : vector<8x128xf32>
    %cst_14 = arith.constant 0.000000e+00 : f32
    %19 = vector.broadcast %cst_14 : f32 to vector<8x128xf32>
    %20 = arith.maximumf %18, %19 : vector<8x128xf32>
    %21 = arith.truncf %20 : vector<8x128xf32> to vector<8x128xbf16>
    %c0_15 = arith.constant 0 : index
    %c0_16 = arith.constant 0 : index
    %22 = vector.load %arg3[%c0_15, %c0_16] : memref<128x128xbf16, #tpu.memory_space<vmem>>, vector<128x128xbf16>
    %cst_17 = arith.constant dense<0.000000e+00> : vector<8x128xf32>
    %23 = tpu.matmul %21, %22, %cst_17 {dimension_numbers = #tpu.dot_dimension_numbers<[1], [0], [0], [1], [0, 0, 1, 1], [], []>} : vector<8x128xbf16>, vector<128x128xbf16>, vector<8x128xf32> -> vector<8x128xf32>
    %c0_18 = arith.constant 0 : index
    %c0_19 = arith.constant 0 : index
    %24 = vector.load %arg4[%c0_18, %c0_19] : memref<1x128xf32, #tpu.memory_space<vmem>>, vector<1x128xf32>
    %25 = vector.broadcast %24 : vector<1x128xf32> to vector<8x128xf32>
    %26 = arith.addf %23, %25 : vector<8x128xf32>
    %c0_20 = arith.constant 0 : index
    %c0_21 = arith.constant 0 : index
    %27 = vector.load %arg5[%c0_20, %c0_21] : memref<8x128xf32, #tpu.memory_space<vmem>>, vector<8x128xf32>
    tpu.vector_store %arg5[%c0_20, %c0_21], %26 {strides = array<i32>} : memref<8x128xf32, #tpu.memory_space<vmem>>, vector<8x128xf32>,
    return
  }
}

</mosaic_0001>

<llo_original>
// kernel: tpu_custom_call.1
$region0: #{tpu_custom_call.1}
  #allocation0 [shape = 'u32[]', space=smem, size = 0x4, offset = 0x4, fixed_abs, tag = 'smem constant byte address 0x4 - core index']
  #allocation1 [shape = 'u32[144,128]{1,0:T(1,128)}', space=vmem, size = 0x12000, scoped, tag = 'internal scratch']
  %s0 = inlined_call_operand.hbm [shape: f32[8,128], index: 0, kind: input, shape index: {}]
  %s1 = inlined_call_operand.hbm [shape: bf16[2,128,128], index: 1, kind: input, shape index: {}]
  %s2 = inlined_call_operand.vmem [shape: f32[2,1,128], index: 2, kind: input, shape index: {}]
  %s3 = inlined_call_operand.hbm [shape: bf16[128,128], index: 3, kind: input, shape index: {}]
  %s4 = inlined_call_operand.vmem [shape: f32[1,128], index: 4, kind: input, shape index: {}]
  %s5 = inlined_call_operand.hbm [shape: f32[8,128], index: 5, kind: output, shape index: {}]
  %s6 = sld [smem:[#allocation0]]
  $region42: #{tpu_custom_call.1} parent=0
    _
  %s8 = ssub.s32 1, %s6
  %s9 = scalar_select 0, %s8, %s6
  $region1: #{tpu_custom_call.1} parent=0
    #allocation2 [shape = 'u8[4096]{0}', space=vmem, size = 0x1000, scoped, tag = 'input window, operand 0, single buffered']
    #allocation3 [shape = 's32[1]{0}', space=sflag, size = 0x4, scoped, tag = 'scoped memory for tpu_custom_call.1']
    #allocation4 [shape = 's32[1]{0}', space=sflag, size = 0x4, scoped, tag = 'scoped memory for tpu_custom_call.1']
    #allocation5 [shape = 'u8[65536]{0}', space=vmem, size = 0x10000, scoped, tag = 'input window, operand 1, single buffered']
    #allocation6 [shape = 's32[1]{0}', space=sflag, size = 0x4, scoped, tag = 'scoped memory for tpu_custom_call.1']
    #allocation7 [shape = 'u8[32768]{0}', space=vmem, size = 0x8000, scoped, tag = 'input window, operand 3, single buffered']
    #allocation8 [shape = 'u8[4096]{0}', space=vmem, size = 0x1000, scoped, tag = 'output window, operand 0, single buffered']
    %10 = vsyncpa [#allocation3], 0
    %11 = vsyncpa [#allocation6], 0
    %12 = vsyncpa [#allocation4], 0
    // Predicated region
    $region2: #{tpu_custom_call.1} parent=1 // pred_check
      _
    $region3: #{tpu_custom_call.1} parent=1 // pred_check_branch
      %14 = sbr.rel (0) target = $region5
    $region4: #{tpu_custom_call.1} parent=1 // pred_region
      %s16 = ssub.s32 128, 128
      %17 = vsyncadd [#allocation3], %s16
      %s19 = sshll.u32 [#allocation2], 4
      %s20 = int_to_ptr.vmem [resolvable:$true] %s19
      %22 = dma.hbm_to_vmem [thread:$0]  %s0, 128, %s20, [#allocation3]
    $region5: #{tpu_custom_call.1} parent=1 // pred_fallthru
      _
    // Predicated region
    $region6: #{tpu_custom_call.1} parent=1 // pred_check
      _
    $region7: #{tpu_custom_call.1} parent=1 // pred_check_branch
      %24 = sbr.rel (0) target = $region9
    $region8: #{tpu_custom_call.1} parent=1 // pred_region
      %s26 = ssub.s32 2048, 2048
      %27 = vsyncadd [#allocation6], %s26
      %s28 = sshll.u32 [#allocation5], 4
      %s29 = int_to_ptr.vmem [resolvable:$true] %s28
      %34 = dma.hbm_to_vmem [thread:$0]  %s1, 2048, %s29, [#allocation6], 64, 64, 4
    $region9: #{tpu_custom_call.1} parent=1 // pred_fallthru
      _
    // Predicated region
    $region10: #{tpu_custom_call.1} parent=1 // pred_check
      _
    $region11: #{tpu_custom_call.1} parent=1 // pred_check_branch
      %36 = sbr.rel (0) target = $region13
    $region12: #{tpu_custom_call.1} parent=1 // pred_region
      _
    $region13: #{tpu_custom_call.1} parent=1 // pred_fallthru
      _
    // Predicated region
    $region14: #{tpu_custom_call.1} parent=1 // pred_check
      _
    $region15: #{tpu_custom_call.1} parent=1 // pred_check_branch
      %38 = sbr.rel (0) target = $region17
    $region16: #{tpu_custom_call.1} parent=1 // pred_region
      %s40 = ssub.s32 1024, 1024
      %41 = vsyncadd [#allocation6], %s40
      %s42 = sshll.u32 [#allocation7], 4
      %s43 = int_to_ptr.vmem [resolvable:$true] %s42
      %48 = dma.hbm_to_vmem [thread:$0]  %s3, 1024, %s43, [#allocation6], 64, 64, 4
    $region17: #{tpu_custom_call.1} parent=1 // pred_fallthru
      _
    // Predicated region
    $region18: #{tpu_custom_call.1} parent=1 // pred_check
      _
    $region19: #{tpu_custom_call.1} parent=1 // pred_check_branch
      %50 = sbr.rel (0) target = $region21
    $region20: #{tpu_custom_call.1} parent=1 // pred_region
      _
    $region21: #{tpu_custom_call.1} parent=1 // pred_fallthru
      _
    // Predicated region
    $region22: #{tpu_custom_call.1} parent=1 // pred_check
      _
    $region23: #{tpu_custom_call.1} parent=1 // pred_check_branch
      %52 = sbr.rel (0) target = $region25
    $region24: #{tpu_custom_call.1} parent=1 // pred_region
      %53 = dma.done [#allocation3], 128
    $region25: #{tpu_custom_call.1} parent=1 // pred_fallthru
      _
    // Predicated region
    $region26: #{tpu_custom_call.1} parent=1 // pred_check
      _
    $region27: #{tpu_custom_call.1} parent=1 // pred_check_branch
      %55 = sbr.rel (0) target = $region29
    $region28: #{tpu_custom_call.1} parent=1 // pred_region
      %56 = dma.done [#allocation6], 2048
    $region29: #{tpu_custom_call.1} parent=1 // pred_fallthru
      _
    // Predicated region
    $region30: #{tpu_custom_call.1} parent=1 // pred_check
      _
    $region31: #{tpu_custom_call.1} parent=1 // pred_check_branch
      %58 = sbr.rel (0) target = $region33
    $region32: #{tpu_custom_call.1} parent=1 // pred_region
      %59 = dma.done [#allocation6], 1024
    $region33: #{tpu_custom_call.1} parent=1 // pred_fallthru
      _
    %v61 = vld [vmem:[#allocation2] sm:$0xff]
    %v62 = vpack.c.bf16 %v61, %v61
    %v63 = vld [vmem:[#allocation5] sm:$0xf]
    %v64 = vld [vmem:[#allocation5 + $0x4] sm:$0xf]
    %v65 = vld [vmem:[#allocation5 + $0x8] sm:$0xf]
    %v66 = vld [vmem:[#allocation5 + $0xc] sm:$0xf]
    %v67 = vld [vmem:[#allocation5 + $0x10] sm:$0xf]
    %v68 = vld [vmem:[#allocation5 + $0x14] sm:$0xf]
    %v69 = vld [vmem:[#allocation5 + $0x18] sm:$0xf]
    %v70 = vld [vmem:[#allocation5 + $0x1c] sm:$0xf]
    %v71 = vld [vmem:[#allocation5 + $0x20] sm:$0xf]
    %v72 = vld [vmem:[#allocation5 + $0x24] sm:$0xf]
    %v73 = vld [vmem:[#allocation5 + $0x28] sm:$0xf]
    %v74 = vld [vmem:[#allocation5 + $0x2c] sm:$0xf]
    %v75 = vld [vmem:[#allocation5 + $0x30] sm:$0xf]
    %v76 = vld [vmem:[#allocation5 + $0x34] sm:$0xf]
    %v77 = vld [vmem:[#allocation5 + $0x38] sm:$0xf]
    %v78 = vld [vmem:[#allocation5 + $0x3c] sm:$0xf]
    %v79 = vld [vmem:[%s2] sm:$0x1]
    %v81 = vlaneseq
    %v82 = vshrl.u32 %v81, 7
    %v83 = vsub.s32 0, %v82
    %v84 = vrot.slane %v79, %v83
    %v102 = vunpack.c.l.b16 %v63
    %v103 = vunpack.c.l.b16 %v64
    %v104 = vunpack.c.l.b16 %v65
    %v105 = vunpack.c.l.b16 %v66
    %v106 = vunpack.c.l.b16 %v67
    %v107 = vunpack.c.l.b16 %v68
    %v108 = vunpack.c.l.b16 %v69
    %v109 = vunpack.c.l.b16 %v70
    %v110 = vunpack.c.l.b16 %v71
    %v111 = vunpack.c.l.b16 %v72
    %v112 = vunpack.c.l.b16 %v73
    %v113 = vunpack.c.l.b16 %v74
    %v114 = vunpack.c.l.b16 %v75
    %v115 = vunpack.c.l.b16 %v76
    %v116 = vunpack.c.l.b16 %v77
    %v117 = vunpack.c.l.b16 %v78
    %v118 = vpack.c.b16 %v103, %v102
    %v119 = vpack.c.b16 %v105, %v104
    %v120 = vpack.c.b16 %v107, %v106
    %v121 = vpack.c.b16 %v109, %v108
    %v122 = vpack.c.b16 %v111, %v110
    %v123 = vpack.c.b16 %v113, %v112
    %v124 = vpack.c.b16 %v115, %v114
    %v125 = vpack.c.b16 %v117, %v116
    %134 = vmatprep.subr.bf16.mxu0 0
    %135 = vmatpush1.bf16.msra.mxu0 %v118
    %136 = vmatprep.subr.bf16.mxu0 0
    %137 = vmatpush1.bf16.msra.mxu0 %v119
    %138 = vmatprep.subr.bf16.mxu0 0
    %139 = vmatpush1.bf16.msra.mxu0 %v120
    %140 = vmatprep.subr.bf16.mxu0 0
    %141 = vmatpush1.bf16.msra.mxu0 %v121
    %142 = vmatprep.subr.bf16.mxu0 0
    %143 = vmatpush1.bf16.msra.mxu0 %v122
    %144 = vmatprep.subr.bf16.mxu0 0
    %145 = vmatpush1.bf16.msra.mxu0 %v123
    %146 = vmatprep.subr.bf16.mxu0 0
    %147 = vmatpush1.bf16.msra.mxu0 %v124
    %148 = vmatprep.subr.bf16.mxu0 0
    %149 = vmatpush1.bf16.msra.mxu0 %v125
    %150 = vmatprep.subr.bf16.mxu0 0
    %151 = vmatpush1.bf16.msra.mxu0 0
    %152 = vmatprep.subr.bf16.mxu0 0
    %153 = vmatpush1.bf16.msra.mxu0 0
    %154 = vmatprep.subr.bf16.mxu0 0
    %155 = vmatpush1.bf16.msra.mxu0 0
    %156 = vmatprep.subr.bf16.mxu0 0
    %157 = vmatpush1.bf16.msra.mxu0 0
    %158 = vmatprep.subr.bf16.mxu0 0
    %159 = vmatpush1.bf16.msra.mxu0 0
    %160 = vmatprep.subr.bf16.mxu0 0
    %161 = vmatpush1.bf16.msra.mxu0 0
    %162 = vmatprep.subr.bf16.mxu0 0
    %163 = vmatpush1.bf16.msra.mxu0 0
    %164 = vmatprep.subr.bf16.mxu0 0
    %165 = vmatpush1.bf16.msra.mxu0 0
    %166 = vmatprep.mubr.bf16.mxu0 0
    %167 = vmatmul.mubr.bf16.gmra.mrb[0].mxu0 %v62
    %v168 = vpop.f32.mrb[0].mxu0
    %v169 = vadd.f32 %v84, %v168
    %v170 = vpop.f32.mrb[0].mxu0
    %v171 = vpop.f32.mrb[0].mxu0
    %v172 = vpop.f32.mrb[0].mxu0
    %173 = vdwg.mxu0
    %v174 = vmax.f32 %v169, 0.0
    %v175 = vpack.c.bf16 %v174, %v174
    %s176 = scalar_lea.vmem [#allocation5], 64
    %v177 = vld [vmem:[%s176] sm:$0xf]
    %v178 = vld [vmem:[%s176 + $0x4] sm:$0xf]
    %v179 = vld [vmem:[%s176 + $0x8] sm:$0xf]
    %v180 = vld [vmem:[%s176 + $0xc] sm:$0xf]
    %v181 = vld [vmem:[%s176 + $0x10] sm:$0xf]
    %v182 = vld [vmem:[%s176 + $0x14] sm:$0xf]
    %v183 = vld [vmem:[%s176 + $0x18] sm:$0xf]
    %v184 = vld [vmem:[%s176 + $0x1c] sm:$0xf]
    %v185 = vld [vmem:[%s176 + $0x20] sm:$0xf]
    %v186 = vld [vmem:[%s176 + $0x24] sm:$0xf]
    %v187 = vld [vmem:[%s176 + $0x28] sm:$0xf]
    %v188 = vld [vmem:[%s176 + $0x2c] sm:$0xf]
    %v189 = vld [vmem:[%s176 + $0x30] sm:$0xf]
    %v190 = vld [vmem:[%s176 + $0x34] sm:$0xf]
    %v191 = vld [vmem:[%s176 + $0x38] sm:$0xf]
    %v192 = vld [vmem:[%s176 + $0x3c] sm:$0xf]
    %s193 = scalar_lea.vmem %s2, 1
    %v194 = vld [vmem:[%s193] sm:$0x1]
    %v196 = vlaneseq
    %v197 = vshrl.u32 %v196, 7
    %v198 = vsub.s32 0, %v197
    %v199 = vrot.slane %v194, %v198
    %v217 = vunpack.c.l.b16 %v177
    %v218 = vunpack.c.l.b16 %v178
    %v219 = vunpack.c.l.b16 %v179
    %v220 = vunpack.c.l.b16 %v180
    %v221 = vunpack.c.l.b16 %v181
    %v222 = vunpack.c.l.b16 %v182
    %v223 = vunpack.c.l.b16 %v183
    %v224 = vunpack.c.l.b16 %v184
    %v225 = vunpack.c.l.b16 %v185
    %v226 = vunpack.c.l.b16 %v186
    %v227 = vunpack.c.l.b16 %v187
    %v228 = vunpack.c.l.b16 %v188
    %v229 = vunpack.c.l.b16 %v189
    %v230 = vunpack.c.l.b16 %v190
    %v231 = vunpack.c.l.b16 %v191
    %v232 = vunpack.c.l.b16 %v192
    %v233 = vpack.c.b16 %v218, %v217
    %v234 = vpack.c.b16 %v220, %v219
    %v235 = vpack.c.b16 %v222, %v221
    %v236 = vpack.c.b16 %v224, %v223
    %v237 = vpack.c.b16 %v226, %v225
    %v238 = vpack.c.b16 %v228, %v227
    %v239 = vpack.c.b16 %v230, %v229
    %v240 = vpack.c.b16 %v232, %v231
    %249 = vmatprep.subr.bf16.mxu0 0
    %250 = vmatpush1.bf16.msra.mxu0 %v233
    %251 = vmatprep.subr.bf16.mxu0 0
    %252 = vmatpush1.bf16.msra.mxu0 %v234
    %253 = vmatprep.subr.bf16.mxu0 0
    %254 = vmatpush1.bf16.msra.mxu0 %v235
    %255 = vmatprep.subr.bf16.mxu0 0
    %256 = vmatpush1.bf16.msra.mxu0 %v236
    %257 = vmatprep.subr.bf16.mxu0 0
    %258 = vmatpush1.bf16.msra.mxu0 %v237
    %259 = vmatprep.subr.bf16.mxu0 0
    %260 = vmatpush1.bf16.msra.mxu0 %v238
    %261 = vmatprep.subr.bf16.mxu0 0
    %262 = vmatpush1.bf16.msra.mxu0 %v239
    %263 = vmatprep.subr.bf16.mxu0 0
    %264 = vmatpush1.bf16.msra.mxu0 %v240
    %265 = vmatprep.subr.bf16.mxu0 0
    %266 = vmatpush1.bf16.msra.mxu0 0
    %267 = vmatprep.subr.bf16.mxu0 0
    %268 = vmatpush1.bf16.msra.mxu0 0
    %269 = vmatprep.subr.bf16.mxu0 0
    %270 = vmatpush1.bf16.msra.mxu0 0
    %271 = vmatprep.subr.bf16.mxu0 0
    %272 = vmatpush1.bf16.msra.mxu0 0
    %273 = vmatprep.subr.bf16.mxu0 0
    %274 = vmatpush1.bf16.msra.mxu0 0
    %275 = vmatprep.subr.bf16.mxu0 0
    %276 = vmatpush1.bf16.msra.mxu0 0
    %277 = vmatprep.subr.bf16.mxu0 0
    %278 = vmatpush1.bf16.msra.mxu0 0
    %279 = vmatprep.subr.bf16.mxu0 0
    %280 = vmatpush1.bf16.msra.mxu0 0
    %281 = vmatprep.mubr.bf16.mxu0 0
    %282 = vmatmul.mubr.bf16.gmra.mrb[0].mxu0 %v175
    %v283 = vpop.f32.mrb[0].mxu0
    %v284 = vadd.f32 %v199, %v283
    %v285 = vpop.f32.mrb[0].mxu0
    %v286 = vpop.f32.mrb[0].mxu0
    %v287 = vpop.f32.mrb[0].mxu0
    %288 = vdwg.mxu0
    %v289 = vmax.f32 %v284, 0.0
    %v290 = vpack.c.bf16 %v289, %v289
    %v291 = vld [vmem:[#allocation7] sm:$0xf]
    %v292 = vld [vmem:[#allocation7 + $0x4] sm:$0xf]
    %v293 = vld [vmem:[#allocation7 + $0x8] sm:$0xf]
    %v294 = vld [vmem:[#allocation7 + $0xc] sm:$0xf]
    %v295 = vld [vmem:[#allocation7 + $0x10] sm:$0xf]
    %v296 = vld [vmem:[#allocation7 + $0x14] sm:$0xf]
    %v297 = vld [vmem:[#allocation7 + $0x18] sm:$0xf]
    %v298 = vld [vmem:[#allocation7 + $0x1c] sm:$0xf]
    %v299 = vld [vmem:[#allocation7 + $0x20] sm:$0xf]
    %v300 = vld [vmem:[#allocation7 + $0x24] sm:$0xf]
    %v301 = vld [vmem:[#allocation7 + $0x28] sm:$0xf]
    %v302 = vld [vmem:[#allocation7 + $0x2c] sm:$0xf]
    %v303 = vld [vmem:[#allocation7 + $0x30] sm:$0xf]
    %v304 = vld [vmem:[#allocation7 + $0x34] sm:$0xf]
    %v305 = vld [vmem:[#allocation7 + $0x38] sm:$0xf]
    %v306 = vld [vmem:[#allocation7 + $0x3c] sm:$0xf]
    %v307 = vld [vmem:[%s4] sm:$0x1]
    %v309 = vlaneseq
    %v310 = vshrl.u32 %v309, 7
    %v311 = vsub.s32 0, %v310
    %v312 = vrot.slane %v307, %v311
    %v330 = vunpack.c.l.b16 %v291
    %v331 = vunpack.c.l.b16 %v292
    %v332 = vunpack.c.l.b16 %v293
    %v333 = vunpack.c.l.b16 %v294
    %v334 = vunpack.c.l.b16 %v295
    %v335 = vunpack.c.l.b16 %v296
    %v336 = vunpack.c.l.b16 %v297
    %v337 = vunpack.c.l.b16 %v298
    %v338 = vunpack.c.l.b16 %v299
    %v339 = vunpack.c.l.b16 %v300
    %v340 = vunpack.c.l.b16 %v301
    %v341 = vunpack.c.l.b16 %v302
    %v342 = vunpack.c.l.b16 %v303
    %v343 = vunpack.c.l.b16 %v304
    %v344 = vunpack.c.l.b16 %v305
    %v345 = vunpack.c.l.b16 %v306
    %v346 = vpack.c.b16 %v331, %v330
    %v347 = vpack.c.b16 %v333, %v332
    %v348 = vpack.c.b16 %v335, %v334
    %v349 = vpack.c.b16 %v337, %v336
    %v350 = vpack.c.b16 %v339, %v338
    %v351 = vpack.c.b16 %v341, %v340
    %v352 = vpack.c.b16 %v343, %v342
    %v353 = vpack.c.b16 %v345, %v344
    %362 = vmatprep.subr.bf16.mxu0 0
    %363 = vmatpush1.bf16.msra.mxu0 %v346
    %364 = vmatprep.subr.bf16.mxu0 0
    %365 = vmatpush1.bf16.msra.mxu0 %v347
    %366 = vmatprep.subr.bf16.mxu0 0
    %367 = vmatpush1.bf16.msra.mxu0 %v348
    %368 = vmatprep.subr.bf16.mxu0 0
    %369 = vmatpush1.bf16.msra.mxu0 %v349
    %370 = vmatprep.subr.bf16.mxu0 0
    %371 = vmatpush1.bf16.msra.mxu0 %v350
    %372 = vmatprep.subr.bf16.mxu0 0
    %373 = vmatpush1.bf16.msra.mxu0 %v351
    %374 = vmatprep.subr.bf16.mxu0 0
    %375 = vmatpush1.bf16.msra.mxu0 %v352
    %376 = vmatprep.subr.bf16.mxu0 0
    %377 = vmatpush1.bf16.msra.mxu0 %v353
    %378 = vmatprep.subr.bf16.mxu0 0
    %379 = vmatpush1.bf16.msra.mxu0 0
    %380 = vmatprep.subr.bf16.mxu0 0
    %381 = vmatpush1.bf16.msra.mxu0 0
    %382 = vmatprep.subr.bf16.mxu0 0
    %383 = vmatpush1.bf16.msra.mxu0 0
    %384 = vmatprep.subr.bf16.mxu0 0
    %385 = vmatpush1.bf16.msra.mxu0 0
    %386 = vmatprep.subr.bf16.mxu0 0
    %387 = vmatpush1.bf16.msra.mxu0 0
    %388 = vmatprep.subr.bf16.mxu0 0
    %389 = vmatpush1.bf16.msra.mxu0 0
    %390 = vmatprep.subr.bf16.mxu0 0
    %391 = vmatpush1.bf16.msra.mxu0 0
    %392 = vmatprep.subr.bf16.mxu0 0
    %393 = vmatpush1.bf16.msra.mxu0 0
    %394 = vmatprep.mubr.bf16.mxu0 0
    %395 = vmatmul.mubr.bf16.gmra.mrb[0].mxu0 %v290
    %v396 = vpop.f32.mrb[0].mxu0
    %v397 = vadd.f32 %v312, %v396
    %v398 = vpop.f32.mrb[0].mxu0
    %v399 = vpop.f32.mrb[0].mxu0
    %v400 = vpop.f32.mrb[0].mxu0
    %401 = vdwg.mxu0
    %402 = vst [vmem:[#allocation8] sm:$0xff] %v397
    // Predicated region
    $region34: #{tpu_custom_call.1} parent=1 // pred_check
      _
    $region35: #{tpu_custom_call.1} parent=1 // pred_check_branch
      %404 = sbr.rel (0) target = $region37
    $region36: #{tpu_custom_call.1} parent=1 // pred_region
      %s406 = ssub.s32 128, 128
      %407 = vsyncadd [#allocation4], %s406
      %s409 = sshll.u32 [#allocation8], 4
      %s410 = int_to_ptr.vmem [resolvable:$true] %s409
      %412 = dma.vmem_to_hbm [thread:$0]  %s410, 128, %s5, [#allocation4]
    $region37: #{tpu_custom_call.1} parent=1 // pred_fallthru
      _
    // Predicated region
    $region38: #{tpu_custom_call.1} parent=1 // pred_check
      _
    $region39: #{tpu_custom_call.1} parent=1 // pred_check_branch
      %414 = sbr.rel (0) target = $region41
    $region40: #{tpu_custom_call.1} parent=1 // pred_region
      %415 = dma.done [#allocation4], 128
    $region41: #{tpu_custom_call.1} parent=1 // pred_fallthru
      _
    %416 = vsyncpa [#allocation3], 1
    %417 = vsyncpa [#allocation6], 1
    %418 = vsyncpa [#allocation4], 1

</llo_original>
